<compile_context>
chip_gen: v6e
topology: v6e:2x2x1
jax: 0.10.0
libtpu: 0.0.40
codegen_flags: <defaults>
</compile_context>

<pallas_src>
import jax
import jax.numpy as jnp
from jax.experimental import pallas as pl
from jax.experimental.pallas import tpu as pltpu

_VMEM_DATA_BUDGET = 24 * 1024 * 1024   # counted per-tile footprint target
_VMEM_LIMIT_BYTES = 40 * 1024 * 1024   # scoped VMEM limit (safe on v5e/v6e/v7x)


def _round_up(x, m):
    return ((x + m - 1) // m) * m


def _round_down(x, m):
    return max(m, (x // m) * m)


def _mlp_kernel(x_ref,
                w1_ref, b1_ref,
                w2_ref, b2_ref,
                w3_ref, b3_ref,
                w4t_ref, b4_ref,
                o_ref):
    """Whole MLP forward (eval mode) for one batch tile, fully resident in VMEM.

    Matmul operands are bf16 (MXU-native on all gens); accumulation, bias add,
    ReLU and sigmoid stay in f32 (v5e has no bf16 VPU).  Dropout = identity.
    """
    x = x_ref[...]                                                  # (bt, F) bf16

    # Block 1: Linear(+folded BN) -> ReLU
    h = jnp.dot(x, w1_ref[...], preferred_element_type=jnp.float32) + b1_ref[...]
    h = jnp.maximum(h, 0.0)

    # Block 2
    h = jnp.dot(h.astype(jnp.bfloat16), w2_ref[...],
                preferred_element_type=jnp.float32) + b2_ref[...]
    h = jnp.maximum(h, 0.0)

    # Block 3
    h = jnp.dot(h.astype(jnp.bfloat16), w3_ref[...],
                preferred_element_type=jnp.float32) + b3_ref[...]
    h = jnp.maximum(h, 0.0)

    # Output head, computed transposed: (1, H3) x (bt, H3) contracted over H3
    # -> (1, bt).  Batch lands on the 128-lane axis, so the store is a dense,
    # unmasked vst and sigmoid only touches bt elements.
    logits_t = jnp.einsum("oh,bh->ob", w4t_ref[...], h.astype(jnp.bfloat16),
                          preferred_element_type=jnp.float32) + b4_ref[...]
    o_ref[...] = jax.nn.sigmoid(logits_t).astype(o_ref.dtype)


def fold_params(params):
    """Fold eval-mode BatchNorm into the Linear layers and prep kernel operands.

    Call ONCE per model (not per inference call): W' = W*s, b' = b*s + t, matmul
    weights cast to bf16, head weight transposed to (1, H3) for the lane-dense
    transposed output.
    """
    f = {}
    for li in (1, 2, 3):
        s, t = params[f"s{li}"], params[f"t{li}"]
        f[f"w{li}"] = (params[f"w{li}"] * s).astype(jnp.bfloat16)
        f[f"b{li}"] = (params[f"b{li}"] * s + t).astype(jnp.float32)
    f["w4t"] = params["w4"].T.astype(jnp.bfloat16)          # (1, H3)
    f["b4"] = params["b4"].reshape(1, 1).astype(jnp.float32)
    return f


def _tile_vmem_bytes(bt, F, H1, H2, H3):
    """Estimated VMEM footprint for one batch tile (counts everything resident)."""
    x_io = 2 * bt * F * 2                       # bf16 x tile, double-buffered
    o_io = 2 * bt * 4                           # (1, bt) f32 out, double-buffered
    wts = (F * H1 + H1 * H2 + H2 * H3 + H3) * 2 \
        + (H1 + H2 + H3 + 1) * 4                # single-buffered weights + f32 biases
    act = bt * (H1 + H2 + H3) * 6               # f32 activations + bf16 casts
    return x_io + o_io + wts + act


def malware_detection_nn_forward(x, folded, *, batch_tile=4096):
    """Eval-mode forward via the Pallas kernel.

    x: (B, F) array (any float dtype; cast to bf16 for the matmuls).
    folded: output of fold_params().
    Returns (B, 1) float32 sigmoid probabilities.
    """
    x = jnp.asarray(x, jnp.bfloat16)
    B, F = x.shape
    H1 = folded["w1"].shape[1]
    H2 = folded["w2"].shape[1]
    H3 = folded["w3"].shape[1]

    # ---- Batch-tile selection.
    if B < 256:
        # Single full-extent block (block dim == full array dim is always legal);
        # too small to benefit from multiple grid steps.
        bt = B
    else:
        # Lane-dense (1, bt) output blocks need bt % 128 == 0.  Cap bt so there are
        # >= 2 grid steps: dimension_semantics=("parallel",) then shards the batch
        # axis across both TensorCores on v7x.
        bt = min(batch_tile, _round_up(pl.cdiv(B, 2), 128))
        bt = _round_down(bt, 128)
        while bt > 128 and _tile_vmem_bytes(bt, F, H1, H2, H3) > _VMEM_DATA_BUDGET:
            bt = _round_down(bt // 2, 128)

    grid = (pl.cdiv(B, bt),)   # Pallas masks the boundary block; no batch padding.

    def rep(shape):
        # Grid-invariant operand: constant index_map, single VMEM buffer.
        return pl.BlockSpec(shape, lambda i: (0,) * len(shape),
                            pipeline_mode=pl.Buffered(1))

    in_specs = [
        pl.BlockSpec((bt, F), lambda i: (i, 0)),        # x: tiled over batch
        rep((F, H1)), rep((1, H1)),
        rep((H1, H2)), rep((1, H2)),
        rep((H2, H3)), rep((1, H3)),
        rep((1, H3)), rep((1, 1)),                      # w4ᵀ, b4
    ]
    out_specs = pl.BlockSpec((1, bt), lambda i: (0, i))  # transposed, lane-dense

    out_t = pl.pallas_call(
        _mlp_kernel,
        out_shape=jax.ShapeDtypeStruct((1, B), jnp.float32),
        grid=grid,
        in_specs=in_specs,
        out_specs=out_specs,
        compiler_params=pltpu.CompilerParams(
            dimension_semantics=("parallel",),
            vmem_limit_bytes=_VMEM_LIMIT_BYTES),
    )(x,
      folded["w1"], folded["b1"],
      folded["w2"], folded["b2"],
      folded["w3"], folded["b3"],
      folded["w4t"], folded["b4"])

    return out_t.reshape(B, 1)


def init_params(key, input_size, hidden_sizes=(128, 64, 32), eps=1e-5):
    """Deterministic synthetic parameters matching the PyTorch module shapes.

    Linear weights stored as (in, out).  BatchNorm is expressed as a per-feature
    affine (scale, shift) derived from gamma=1, beta=0 and synthetic running stats.
    """
    dims = [input_size] + list(hidden_sizes)
    params = {}
    keys = jax.random.split(key, 16)
    k_idx = 0

    for li, (din, dout) in enumerate(zip(dims[:-1], dims[1:]), start=1):
        bound = 1.0 / jnp.sqrt(jnp.float32(din))
        w = jax.random.uniform(keys[k_idx], (din, dout), jnp.float32, -bound, bound)
        b = jax.random.uniform(keys[k_idx + 1], (1, dout), jnp.float32, -bound, bound)
        k_idx += 2
        running_mean = 0.05 * jax.random.normal(keys[k_idx], (1, dout), jnp.float32)
        running_var = 1.0 + 0.1 * jax.random.uniform(keys[k_idx + 1], (1, dout), jnp.float32)
        k_idx += 2
        gamma = jnp.ones((1, dout), jnp.float32)
        beta = jnp.zeros((1, dout), jnp.float32)
        scale = gamma / jnp.sqrt(running_var + eps)
        shift = beta - running_mean * scale
        params[f"w{li}"] = w
        params[f"b{li}"] = b
        params[f"s{li}"] = scale
        params[f"t{li}"] = shift

    din, dout = dims[-1], 1
    bound = 1.0 / jnp.sqrt(jnp.float32(din))
    params["w4"] = jax.random.uniform(keys[k_idx], (din, dout), jnp.float32, -bound, bound)
    params["b4"] = jax.random.uniform(keys[k_idx + 1], (1, dout), jnp.float32, -bound, bound)
    return params


def reference_forward(x, params):
    """Pure-JAX f32 reference of the same eval-mode forward (unfolded BN)."""
    h = jnp.asarray(x, jnp.float32)
    for li in range(1, 4):
        h = h @ params[f"w{li}"] + params[f"b{li}"]
        h = h * params[f"s{li}"] + params[f"t{li}"]
        h = jnp.maximum(h, 0.0)
    logits = h @ params["w4"] + params["b4"]
    return jax.nn.sigmoid(logits)


if __name__ == "__main__":
    # Small deterministic example: batch=256, input features=48 (non-128-aligned,
    # no padding needed); tile-cap keeps >= 2 grid steps -> bt=128, grid=(2,).
    key = jax.random.PRNGKey(0)
    k_x, k_p = jax.random.split(key)

    B, F = 256, 48
    x = jax.random.normal(k_x, (B, F), jnp.float32)
    params = init_params(k_p, input_size=F, hidden_sizes=(128, 64, 32))
    folded = fold_params(params)   # one-time BN fold / transpose / bf16 cast

    out = malware_detection_nn_forward(x, folded)
    out = jax.block_until_ready(out)

    ref = reference_forward(x, params)
    assert out.shape == (B, 1)
    # bf16 matmul inputs vs f32 reference -> loosened tolerance.
    assert jnp.allclose(out, ref, atol=2e-2, rtol=2e-2), "mismatch vs reference"

    # TODO(synk): training-mode Dropout / batch-statistic BatchNorm not implemented
    # (forward follows eval semantics: dropout=identity, BN uses running stats).
    print("KERNEL_OK")
</pallas_src>

<mosaic_0001>
module attributes {stable_mosaic.version = 11 : i64} {
  func.func @_mlp_kernel(%arg0: i32, %arg1: memref<128x48xbf16, #tpu.memory_space<vmem>>, %arg2: memref<48x128xbf16, #tpu.memory_space<vmem>>, %arg3: memref<1x128xf32, #tpu.memory_space<vmem>>, %arg4: memref<128x64xbf16, #tpu.memory_space<vmem>>, %arg5: memref<1x64xf32, #tpu.memory_space<vmem>>, %arg6: memref<64x32xbf16, #tpu.memory_space<vmem>>, %arg7: memref<1x32xf32, #tpu.memory_space<vmem>>, %arg8: memref<1x32xbf16, #tpu.memory_space<vmem>>, %arg9: memref<1x1xf32, #tpu.memory_space<vmem>>, %arg10: memref<1x128xf32, #tpu.memory_space<vmem>>) attributes {dimension_semantics = [#tpu.dimension_semantics<parallel>], iteration_bounds = array<i64: 2>, scalar_prefetch = 0 : i64, scratch_operands = 0 : i64, tpu.core_type = #tpu.core_type<tc>, window_params = [{transform_indices = @transform_0, window_bounds = array<i64: 128, 48>}, {pipeline_mode = #tpu.pipeline_mode<synchronous>, transform_indices = @transform_1, window_bounds = array<i64: 48, 128>}, {pipeline_mode = #tpu.pipeline_mode<synchronous>, transform_indices = @transform_2, window_bounds = array<i64: 1, 128>}, {pipeline_mode = #tpu.pipeline_mode<synchronous>, transform_indices = @transform_3, window_bounds = array<i64: 128, 64>}, {pipeline_mode = #tpu.pipeline_mode<synchronous>, transform_indices = @transform_4, window_bounds = array<i64: 1, 64>}, {pipeline_mode = #tpu.pipeline_mode<synchronous>, transform_indices = @transform_5, window_bounds = array<i64: 64, 32>}, {pipeline_mode = #tpu.pipeline_mode<synchronous>, transform_indices = @transform_6, window_bounds = array<i64: 1, 32>}, {pipeline_mode = #tpu.pipeline_mode<synchronous>, transform_indices = @transform_7, window_bounds = array<i64: 1, 32>}, {pipeline_mode = #tpu.pipeline_mode<synchronous>, transform_indices = @transform_8, window_bounds = array<i64: 1, 1>}, {transform_indices = @transform_9, window_bounds = array<i64: 1, 128>}]} {
    %c0 = arith.constant 0 : index
    %c0_0 = arith.constant 0 : index
    %0 = vector.load %arg1[%c0, %c0_0] : memref<128x48xbf16, #tpu.memory_space<vmem>>, vector<128x48xbf16>
    %c0_1 = arith.constant 0 : index
    %c0_2 = arith.constant 0 : index
    %1 = vector.load %arg2[%c0_1, %c0_2] : memref<48x128xbf16, #tpu.memory_space<vmem>>, vector<48x128xbf16>
    %cst = arith.constant dense<0.000000e+00> : vector<128x128xf32>
    %2 = tpu.matmul %0, %1, %cst {dimension_numbers = #tpu.dot_dimension_numbers<[1], [0], [0], [1], [0, 0, 1, 1], [], []>} : vector<128x48xbf16>, vector<48x128xbf16>, vector<128x128xf32> -> vector<128x128xf32>
    %c0_3 = arith.constant 0 : index
    %c0_4 = arith.constant 0 : index
    %3 = vector.load %arg3[%c0_3, %c0_4] : memref<1x128xf32, #tpu.memory_space<vmem>>, vector<1x128xf32>
    %4 = vector.broadcast %3 : vector<1x128xf32> to vector<128x128xf32>
    %5 = arith.addf %2, %4 : vector<128x128xf32>
    %cst_5 = arith.constant 0.000000e+00 : f32
    %6 = vector.broadcast %cst_5 : f32 to vector<128x128xf32>
    %7 = arith.maximumf %5, %6 : vector<128x128xf32>
    %8 = arith.truncf %7 : vector<128x128xf32> to vector<128x128xbf16>
    %c0_6 = arith.constant 0 : index
    %c0_7 = arith.constant 0 : index
    %9 = vector.load %arg4[%c0_6, %c0_7] : memref<128x64xbf16, #tpu.memory_space<vmem>>, vector<128x64xbf16>
    %cst_8 = arith.constant dense<0.000000e+00> : vector<128x64xf32>
    %10 = tpu.matmul %8, %9, %cst_8 {dimension_numbers = #tpu.dot_dimension_numbers<[1], [0], [0], [1], [0, 0, 1, 1], [], []>} : vector<128x128xbf16>, vector<128x64xbf16>, vector<128x64xf32> -> vector<128x64xf32>
    %c0_9 = arith.constant 0 : index
    %c0_10 = arith.constant 0 : index
    %11 = vector.load %arg5[%c0_9, %c0_10] : memref<1x64xf32, #tpu.memory_space<vmem>>, vector<1x64xf32>
    %12 = vector.broadcast %11 : vector<1x64xf32> to vector<128x64xf32>
    %13 = arith.addf %10, %12 : vector<128x64xf32>
    %cst_11 = arith.constant 0.000000e+00 : f32
    %14 = vector.broadcast %cst_11 : f32 to vector<128x64xf32>
    %15 = arith.maximumf %13, %14 : vector<128x64xf32>
    %16 = arith.truncf %15 : vector<128x64xf32> to vector<128x64xbf16>
    %c0_12 = arith.constant 0 : index
    %c0_13 = arith.constant 0 : index
    %17 = vector.load %arg6[%c0_12, %c0_13] : memref<64x32xbf16, #tpu.memory_space<vmem>>, vector<64x32xbf16>
    %cst_14 = arith.constant dense<0.000000e+00> : vector<128x32xf32>
    %18 = tpu.matmul %16, %17, %cst_14 {dimension_numbers = #tpu.dot_dimension_numbers<[1], [0], [0], [1], [0, 0, 1, 1], [], []>} : vector<128x64xbf16>, vector<64x32xbf16>, vector<128x32xf32> -> vector<128x32xf32>
    %c0_15 = arith.constant 0 : index
    %c0_16 = arith.constant 0 : index
    %19 = vector.load %arg7[%c0_15, %c0_16] : memref<1x32xf32, #tpu.memory_space<vmem>>, vector<1x32xf32>
    %20 = vector.broadcast %19 : vector<1x32xf32> to vector<128x32xf32>
    %21 = arith.addf %18, %20 : vector<128x32xf32>
    %cst_17 = arith.constant 0.000000e+00 : f32
    %22 = vector.broadcast %cst_17 : f32 to vector<128x32xf32>
    %23 = arith.maximumf %21, %22 : vector<128x32xf32>
    %c0_18 = arith.constant 0 : index
    %c0_19 = arith.constant 0 : index
    %24 = vector.load %arg8[%c0_18, %c0_19] : memref<1x32xbf16, #tpu.memory_space<vmem>>, vector<1x32xbf16>
    %25 = arith.truncf %23 : vector<128x32xf32> to vector<128x32xbf16>
    "tpu.trace_start"() <{level = 10 : i32, message = "oh,bh->ob"}> : () -> ()
    %cst_20 = arith.constant dense<0.000000e+00> : vector<1x128xf32>
    %26 = tpu.matmul %24, %25, %cst_20 {dimension_numbers = #tpu.dot_dimension_numbers<[1], [1], [0], [0], [0, 0, 1, 0], [], []>} : vector<1x32xbf16>, vector<128x32xbf16>, vector<1x128xf32> -> vector<1x128xf32>
    "tpu.trace_stop"() : () -> ()
    %c0_21 = arith.constant 0 : index
    %c0_22 = arith.constant 0 : index
    %27 = vector.load %arg9[%c0_21, %c0_22] : memref<1x1xf32, #tpu.memory_space<vmem>>, vector<1x1xf32>
    %28 = vector.broadcast %27 : vector<1x1xf32> to vector<1x128xf32>
    %29 = arith.addf %26, %28 : vector<1x128xf32>
    %30 = arith.negf %29 : vector<1x128xf32>
    %31 = math.exp %30 : vector<1x128xf32>
    %cst_23 = arith.constant 1.000000e+00 : f32
    %32 = vector.broadcast %cst_23 : f32 to vector<1x128xf32>
    %33 = arith.addf %32, %31 : vector<1x128xf32>
    %34 = arith.divf %32, %33 : vector<1x128xf32>
    %c0_24 = arith.constant 0 : index
    %c0_25 = arith.constant 0 : index
    %35 = vector.load %arg10[%c0_24, %c0_25] : memref<1x128xf32, #tpu.memory_space<vmem>>, vector<1x128xf32>
    tpu.vector_store %arg10[%c0_24, %c0_25], %34 {strides = array<i32>} : memref<1x128xf32, #tpu.memory_space<vmem>>, vector<1x128xf32>,
    return
  }
  func.func @transform_0(%arg0: i32) -> (i32, i32) {
    %c0_i32 = arith.constant 0 : i32
    %c0_i32_0 = arith.constant 0 : i32
    return %arg0, %c0_i32 : i32, i32
  }
  func.func @transform_1(%arg0: i32) -> (i32, i32) {
    %c0_i32 = arith.constant 0 : i32
    %c0_i32_0 = arith.constant 0 : i32
    %c0_i32_1 = arith.constant 0 : i32
    return %c0_i32, %c0_i32_0 : i32, i32
  }
  func.func @transform_2(%arg0: i32) -> (i32, i32) {
    %c0_i32 = arith.constant 0 : i32
    %c0_i32_0 = arith.constant 0 : i32
    %c0_i32_1 = arith.constant 0 : i32
    return %c0_i32, %c0_i32_0 : i32, i32
  }
  func.func @transform_3(%arg0: i32) -> (i32, i32) {
    %c0_i32 = arith.constant 0 : i32
    %c0_i32_0 = arith.constant 0 : i32
    %c0_i32_1 = arith.constant 0 : i32
    return %c0_i32, %c0_i32_0 : i32, i32
  }
  func.func @transform_4(%arg0: i32) -> (i32, i32) {
    %c0_i32 = arith.constant 0 : i32
    %c0_i32_0 = arith.constant 0 : i32
    %c0_i32_1 = arith.constant 0 : i32
    return %c0_i32, %c0_i32_0 : i32, i32
  }
  func.func @transform_5(%arg0: i32) -> (i32, i32) {
    %c0_i32 = arith.constant 0 : i32
    %c0_i32_0 = arith.constant 0 : i32
    %c0_i32_1 = arith.constant 0 : i32
    return %c0_i32, %c0_i32_0 : i32, i32
  }
  func.func @transform_6(%arg0: i32) -> (i32, i32) {
    %c0_i32 = arith.constant 0 : i32
    %c0_i32_0 = arith.constant 0 : i32
    %c0_i32_1 = arith.constant 0 : i32
    return %c0_i32, %c0_i32_0 : i32, i32
  }
  func.func @transform_7(%arg0: i32) -> (i32, i32) {
    %c0_i32 = arith.constant 0 : i32
    %c0_i32_0 = arith.constant 0 : i32
    %c0_i32_1 = arith.constant 0 : i32
    return %c0_i32, %c0_i32_0 : i32, i32
  }
  func.func @transform_8(%arg0: i32) -> (i32, i32) {
    %c0_i32 = arith.constant 0 : i32
    %c0_i32_0 = arith.constant 0 : i32
    %c0_i32_1 = arith.constant 0 : i32
    return %c0_i32, %c0_i32_0 : i32, i32
  }
  func.func @transform_9(%arg0: i32) -> (i32, i32) {
    %c0_i32 = arith.constant 0 : i32
    %c0_i32_0 = arith.constant 0 : i32
    return %c0_i32, %arg0 : i32, i32
  }
}

</mosaic_0001>

<llo_original>
// kernel: tpu_custom_call.1
$region0: #{tpu_custom_call.1}
  #allocation0 [shape = 'u32[]', space=smem, size = 0x4, offset = 0x4, fixed_abs, tag = 'smem constant byte address 0x4 - core index']
  #allocation1 [shape = 'u32[144,128]{1,0:T(1,128)}', space=vmem, size = 0x12000, scoped, tag = 'internal scratch']
  #allocation2 [shape = 'f32[1,1]{1,0:T(1,128)S(1)}', space=vmem, size = 0x200, scoped, tag = 'scoped memory for tpu_custom_call.1']
  %s0 = inlined_call_operand.vmem [shape: bf16[256,48], index: 0, kind: input, shape index: {}]
  %s1 = inlined_call_operand.vmem [shape: bf16[48,128], index: 1, kind: input, shape index: {}]
  %s2 = inlined_call_operand.vmem [shape: f32[1,128], index: 2, kind: input, shape index: {}]
  %s3 = inlined_call_operand.vmem [shape: bf16[128,64], index: 3, kind: input, shape index: {}]
  %s4 = inlined_call_operand.vmem [shape: f32[1,64], index: 4, kind: input, shape index: {}]
  %s5 = inlined_call_operand.vmem [shape: bf16[64,32], index: 5, kind: input, shape index: {}]
  %s6 = inlined_call_operand.vmem [shape: f32[1,32], index: 6, kind: input, shape index: {}]
  %s7 = inlined_call_operand.vmem [shape: bf16[1,32], index: 7, kind: input, shape index: {}]
  %s8 = inlined_call_operand.<no memory space> [shape: f32[1,1], index: 8, kind: input, shape index: {}]
  %s9 = inlined_call_operand.hbm [shape: f32[1,256], index: 9, kind: output, shape index: {}]
  %s10 = sld [smem:[#allocation0]]
  $region69: #{tpu_custom_call.1} parent=0
    _
  %s12 = ssub.s32 1, %s10
  %s13 = scalar_select 0, %s12, %s10
  %v14 = vstv %s8
  %15 = vst [vmem:[#allocation2] sm:$0x1] %v14
  $region1: #{tpu_custom_call.1} parent=0
    #allocation3 [shape = 'u8[1024]{0}', space=vmem, size = 0x400, scoped, tag = 'output window, operand 0']
    #allocation4 [shape = 's32[2]{0}', space=sflag, size = 0x8, scoped, tag = 'scoped memory for tpu_custom_call.1']
    %16 = vsyncpa [#allocation4], 0
    %s17 = scalar_lea.sflag [#allocation4], 1
    %18 = vsyncpa %s17, 0
    loop: start=0, step=1, limit=4
    $region2: #{tpu_custom_call.1} parent=1 // loop_pre_header
      _
    $region3: #{tpu_custom_call.1} parent=1 // loop_header
      %s20 = sphi 0, %s24
      %p21 = scmp.ge.s32.totalorder %s20, 4
      %s30 = sphi 0, %s32
      %s33 = sphi 0, %s30
      %s34 = sphi 0, %s33
      %s50 = sphi 0, %s34
      %s54 = sphi 0, %s54
      %s56 = sphi 0, %s54
      %s57 = sphi 0, %s56
      %s71 = sphi 0, %s57
      %s75 = sphi 0, %s75
      %s77 = sphi 0, %s75
      %s78 = sphi 0, %s77
      %s92 = sphi 0, %s78
      %s96 = sphi 0, %s96
      %s98 = sphi 0, %s96
      %s99 = sphi 0, %s98
      %s113 = sphi 0, %s99
      %s117 = sphi 0, %s117
      %s119 = sphi 0, %s117
      %s120 = sphi 0, %s119
      %s134 = sphi 0, %s120
      %s138 = sphi 0, %s138
      %s140 = sphi 0, %s138
      %s141 = sphi 0, %s140
      %s155 = sphi 0, %s141
      %s159 = sphi 0, %s159
      %s161 = sphi 0, %s159
      %s162 = sphi 0, %s161
      %s176 = sphi 0, %s162
      %s180 = sphi 0, %s180
      %s182 = sphi 0, %s180
      %s183 = sphi 0, %s182
      %s197 = sphi 0, %s183
      %s201 = sphi 0, %s201
      %s203 = sphi 0, %s201
      %s204 = sphi 0, %s203
      %s218 = sphi 0, %s204
      %s224 = sphi 0, %s226
      %s227 = sphi 0, %s224
      %s228 = sphi 0, %s227
      %s244 = sphi 0, %s228
    $region4: #{tpu_custom_call.1} parent=1 // loop_header_branch
      %23 = sbr.rel (%p21) target = $region8
    $region5: #{tpu_custom_call.1} parent=1 // loop_body
      %s25 = ssub.s32 %s20, 1
      %s26 = ssub.s32 %s20, 2
      %s27 = sadd.s32 %s20, 1
      %s28 = ssub.s32 %s20, %s27
      %p29 = scmp.eq.s32.totalorder %s28, 0
      %s31 = sadd.s32 %s30, 1
      %s32 = scalar_select %p29, %s30, %s31
      %p35 = pneg %p29
      %p36 = scmp.eq.s32.totalorder %s20, 1
      %p37 = por %p35, %p36
      %p38 = scmp.ne.s32.totalorder %s30, %s33
      %p39 = scmp.eq.s32.totalorder %s20, 0
      %p40 = por %p38, %p39
      %p41 = scmp.ne.s32.totalorder %s30, %s33
      %p42 = scmp.eq.s32.totalorder %s25, 1
      %p43 = por %p41, %p42
      %p44 = scmp.ne.s32.totalorder %s33, %s34
      %p45 = scmp.eq.s32.totalorder %s25, 0
      %p46 = por %p44, %p45
      %p47 = scmp.ne.s32.totalorder %s33, %s34
      %p48 = scmp.eq.s32.totalorder %s26, 1
      %p49 = por %p47, %p48
      %p51 = scmp.ne.s32.totalorder %s34, %s50
      %p52 = scmp.eq.s32.totalorder %s26, 0
      %p53 = por %p51, %p52
      %s55 = sadd.s32 %s54, 1
      %p58 = scmp.eq.s32.totalorder %s20, 1
      %p59 = scmp.ne.s32.totalorder %s54, %s56
      %p60 = scmp.eq.s32.totalorder %s20, 0
      %p61 = por %p59, %p60
      %p62 = scmp.ne.s32.totalorder %s54, %s56
      %p63 = scmp.eq.s32.totalorder %s25, 1
      %p64 = por %p62, %p63
      %p65 = scmp.ne.s32.totalorder %s56, %s57
      %p66 = scmp.eq.s32.totalorder %s25, 0
      %p67 = por %p65, %p66
      %p68 = scmp.ne.s32.totalorder %s56, %s57
      %p69 = scmp.eq.s32.totalorder %s26, 1
      %p70 = por %p68, %p69
      %p72 = scmp.ne.s32.totalorder %s57, %s71
      %p73 = scmp.eq.s32.totalorder %s26, 0
      %p74 = por %p72, %p73
      %s76 = sadd.s32 %s75, 1
      %p79 = scmp.eq.s32.totalorder %s20, 1
      %p80 = scmp.ne.s32.totalorder %s75, %s77
      %p81 = scmp.eq.s32.totalorder %s20, 0
      %p82 = por %p80, %p81
      %p83 = scmp.ne.s32.totalorder %s75, %s77
      %p84 = scmp.eq.s32.totalorder %s25, 1
      %p85 = por %p83, %p84
      %p86 = scmp.ne.s32.totalorder %s77, %s78
      %p87 = scmp.eq.s32.totalorder %s25, 0
      %p88 = por %p86, %p87
      %p89 = scmp.ne.s32.totalorder %s77, %s78
      %p90 = scmp.eq.s32.totalorder %s26, 1
      %p91 = por %p89, %p90
      %p93 = scmp.ne.s32.totalorder %s78, %s92
      %p94 = scmp.eq.s32.totalorder %s26, 0
      %p95 = por %p93, %p94
      %s97 = sadd.s32 %s96, 1
      %p100 = scmp.eq.s32.totalorder %s20, 1
      %p101 = scmp.ne.s32.totalorder %s96, %s98
      %p102 = scmp.eq.s32.totalorder %s20, 0
      %p103 = por %p101, %p102
      %p104 = scmp.ne.s32.totalorder %s96, %s98
      %p105 = scmp.eq.s32.totalorder %s25, 1
      %p106 = por %p104, %p105
      %p107 = scmp.ne.s32.totalorder %s98, %s99
      %p108 = scmp.eq.s32.totalorder %s25, 0
      %p109 = por %p107, %p108
      %p110 = scmp.ne.s32.totalorder %s98, %s99
      %p111 = scmp.eq.s32.totalorder %s26, 1
      %p112 = por %p110, %p111
      %p114 = scmp.ne.s32.totalorder %s99, %s113
      %p115 = scmp.eq.s32.totalorder %s26, 0
      %p116 = por %p114, %p115
      %s118 = sadd.s32 %s117, 1
      %p121 = scmp.eq.s32.totalorder %s20, 1
      %p122 = scmp.ne.s32.totalorder %s117, %s119
      %p123 = scmp.eq.s32.totalorder %s20, 0
      %p124 = por %p122, %p123
      %p125 = scmp.ne.s32.totalorder %s117, %s119
      %p126 = scmp.eq.s32.totalorder %s25, 1
      %p127 = por %p125, %p126
      %p128 = scmp.ne.s32.totalorder %s119, %s120
      %p129 = scmp.eq.s32.totalorder %s25, 0
      %p130 = por %p128, %p129
      %p131 = scmp.ne.s32.totalorder %s119, %s120
      %p132 = scmp.eq.s32.totalorder %s26, 1
      %p133 = por %p131, %p132
      %p135 = scmp.ne.s32.totalorder %s120, %s134
      %p136 = scmp.eq.s32.totalorder %s26, 0
      %p137 = por %p135, %p136
      %s139 = sadd.s32 %s138, 1
      %p142 = scmp.eq.s32.totalorder %s20, 1
      %p143 = scmp.ne.s32.totalorder %s138, %s140
      %p144 = scmp.eq.s32.totalorder %s20, 0
      %p145 = por %p143, %p144
      %p146 = scmp.ne.s32.totalorder %s138, %s140
      %p147 = scmp.eq.s32.totalorder %s25, 1
      %p148 = por %p146, %p147
      %p149 = scmp.ne.s32.totalorder %s140, %s141
      %p150 = scmp.eq.s32.totalorder %s25, 0
      %p151 = por %p149, %p150
      %p152 = scmp.ne.s32.totalorder %s140, %s141
      %p153 = scmp.eq.s32.totalorder %s26, 1
      %p154 = por %p152, %p153
      %p156 = scmp.ne.s32.totalorder %s141, %s155
      %p157 = scmp.eq.s32.totalorder %s26, 0
      %p158 = por %p156, %p157
      %s160 = sadd.s32 %s159, 1
      %p163 = scmp.eq.s32.totalorder %s20, 1
      %p164 = scmp.ne.s32.totalorder %s159, %s161
      %p165 = scmp.eq.s32.totalorder %s20, 0
      %p166 = por %p164, %p165
      %p167 = scmp.ne.s32.totalorder %s159, %s161
      %p168 = scmp.eq.s32.totalorder %s25, 1
      %p169 = por %p167, %p168
      %p170 = scmp.ne.s32.totalorder %s161, %s162
      %p171 = scmp.eq.s32.totalorder %s25, 0
      %p172 = por %p170, %p171
      %p173 = scmp.ne.s32.totalorder %s161, %s162
      %p174 = scmp.eq.s32.totalorder %s26, 1
      %p175 = por %p173, %p174
      %p177 = scmp.ne.s32.totalorder %s162, %s176
      %p178 = scmp.eq.s32.totalorder %s26, 0
      %p179 = por %p177, %p178
      %s181 = sadd.s32 %s180, 1
      %p184 = scmp.eq.s32.totalorder %s20, 1
      %p185 = scmp.ne.s32.totalorder %s180, %s182
      %p186 = scmp.eq.s32.totalorder %s20, 0
      %p187 = por %p185, %p186
      %p188 = scmp.ne.s32.totalorder %s180, %s182
      %p189 = scmp.eq.s32.totalorder %s25, 1
      %p190 = por %p188, %p189
      %p191 = scmp.ne.s32.totalorder %s182, %s183
      %p192 = scmp.eq.s32.totalorder %s25, 0
      %p193 = por %p191, %p192
      %p194 = scmp.ne.s32.totalorder %s182, %s183
      %p195 = scmp.eq.s32.totalorder %s26, 1
      %p196 = por %p194, %p195
      %p198 = scmp.ne.s32.totalorder %s183, %s197
      %p199 = scmp.eq.s32.totalorder %s26, 0
      %p200 = por %p198, %p199
      %s202 = sadd.s32 %s201, 1
      %p205 = scmp.eq.s32.totalorder %s20, 1
      %p206 = scmp.ne.s32.totalorder %s201, %s203
      %p207 = scmp.eq.s32.totalorder %s20, 0
      %p208 = por %p206, %p207
      %p209 = scmp.ne.s32.totalorder %s201, %s203
      %p210 = scmp.eq.s32.totalorder %s25, 1
      %p211 = por %p209, %p210
      %p212 = scmp.ne.s32.totalorder %s203, %s204
      %p213 = scmp.eq.s32.totalorder %s25, 0
      %p214 = por %p212, %p213
      %p215 = scmp.ne.s32.totalorder %s203, %s204
      %p216 = scmp.eq.s32.totalorder %s26, 1
      %p217 = por %p215, %p216
      %p219 = scmp.ne.s32.totalorder %s204, %s218
      %p220 = scmp.eq.s32.totalorder %s26, 0
      %p221 = por %p219, %p220
      %s222 = ssub.s32 %s20, %s27
      %p223 = scmp.eq.s32.totalorder %s222, 0
      %s225 = sadd.s32 %s224, 1
      %s226 = scalar_select %p223, %s224, %s225
      %p229 = pneg %p223
      %p230 = scmp.eq.s32.totalorder %s20, 1
      %p231 = por %p229, %p230
      %p232 = scmp.ne.s32.totalorder %s224, %s227
      %p233 = scmp.eq.s32.totalorder %s20, 0
      %p234 = por %p232, %p233
      %p235 = scmp.ne.s32.totalorder %s224, %s227
      %p236 = scmp.eq.s32.totalorder %s25, 1
      %p237 = por %p235, %p236
      %p238 = scmp.ne.s32.totalorder %s227, %s228
      %p239 = scmp.eq.s32.totalorder %s25, 0
      %p240 = por %p238, %p239
      %p241 = scmp.ne.s32.totalorder %s227, %s228
      %p242 = scmp.eq.s32.totalorder %s26, 1
      %p243 = por %p241, %p242
      %p245 = scmp.ne.s32.totalorder %s228, %s244
      %p246 = scmp.eq.s32.totalorder %s26, 0
      %p247 = por %p245, %p246
      %p248 = scmp.le.s32.totalorder 1, %s20
      %p249 = scmp.lt.s32.totalorder %s20, 3
      %p250 = pnand %p248, %p249
      %p251 = pneg %p250
      // Predicated region
      $region9: #{tpu_custom_call.1} parent=5 // pred_check
        _
      $region10: #{tpu_custom_call.1} parent=5 // pred_check_branch
        %253 = sbr.rel (%p250) target = $region12
      $region11: #{tpu_custom_call.1} parent=5 // pred_region
        %s254 = ssub.s32 %s20, 1
        // Predicated region
        $region13: #{tpu_custom_call.1} parent=11 // pred_check
          %p255 = pneg %p67
        $region14: #{tpu_custom_call.1} parent=11 // pred_check_branch
          %257 = sbr.rel (%p255) target = $region16
        $region15: #{tpu_custom_call.1} parent=11 // pred_region
          _
        $region16: #{tpu_custom_call.1} parent=11 // pred_fallthru
          _
        // Predicated region
        $region17: #{tpu_custom_call.1} parent=11 // pred_check
          %p258 = pneg %p88
        $region18: #{tpu_custom_call.1} parent=11 // pred_check_branch
          %260 = sbr.rel (%p258) target = $region20
        $region19: #{tpu_custom_call.1} parent=11 // pred_region
          _
        $region20: #{tpu_custom_call.1} parent=11 // pred_fallthru
          _
        // Predicated region
        $region21: #{tpu_custom_call.1} parent=11 // pred_check
          %p261 = pneg %p109
        $region22: #{tpu_custom_call.1} parent=11 // pred_check_branch
          %263 = sbr.rel (%p261) target = $region24
        $region23: #{tpu_custom_call.1} parent=11 // pred_region
          _
        $region24: #{tpu_custom_call.1} parent=11 // pred_fallthru
          _
        // Predicated region
        $region25: #{tpu_custom_call.1} parent=11 // pred_check
          %p264 = pneg %p130
        $region26: #{tpu_custom_call.1} parent=11 // pred_check_branch
          %266 = sbr.rel (%p264) target = $region28
        $region27: #{tpu_custom_call.1} parent=11 // pred_region
          _
        $region28: #{tpu_custom_call.1} parent=11 // pred_fallthru
          _
        // Predicated region
        $region29: #{tpu_custom_call.1} parent=11 // pred_check
          %p267 = pneg %p151
        $region30: #{tpu_custom_call.1} parent=11 // pred_check_branch
          %269 = sbr.rel (%p267) target = $region32
        $region31: #{tpu_custom_call.1} parent=11 // pred_region
          _
        $region32: #{tpu_custom_call.1} parent=11 // pred_fallthru
          _
        // Predicated region
        $region33: #{tpu_custom_call.1} parent=11 // pred_check
          %p270 = pneg %p172
        $region34: #{tpu_custom_call.1} parent=11 // pred_check_branch
          %272 = sbr.rel (%p270) target = $region36
        $region35: #{tpu_custom_call.1} parent=11 // pred_region
          _
        $region36: #{tpu_custom_call.1} parent=11 // pred_fallthru
          _
        // Predicated region
        $region37: #{tpu_custom_call.1} parent=11 // pred_check
          %p273 = pneg %p193
        $region38: #{tpu_custom_call.1} parent=11 // pred_check_branch
          %275 = sbr.rel (%p273) target = $region40
        $region39: #{tpu_custom_call.1} parent=11 // pred_region
          _
        $region40: #{tpu_custom_call.1} parent=11 // pred_fallthru
          _
        // Predicated region
        $region41: #{tpu_custom_call.1} parent=11 // pred_check
          %p276 = pneg %p214
        $region42: #{tpu_custom_call.1} parent=11 // pred_check_branch
          %278 = sbr.rel (%p276) target = $region44
        $region43: #{tpu_custom_call.1} parent=11 // pred_region
          _
        $region44: #{tpu_custom_call.1} parent=11 // pred_fallthru
          _
      $region12: #{tpu_custom_call.1} parent=5 // pred_fallthru
        _
      %p279 = scmp.lt.s32.totalorder %s20, 2
      // Predicated region
      $region45: #{tpu_custom_call.1} parent=5 // pred_check
        %p280 = pneg %p279
      $region46: #{tpu_custom_call.1} parent=5 // pred_check_branch
        %282 = sbr.rel (%p280) target = $region48
      $region47: #{tpu_custom_call.1} parent=5 // pred_region
        // Predicated region
        $region49: #{tpu_custom_call.1} parent=47 // pred_check
          %p283 = pneg %p40
        $region50: #{tpu_custom_call.1} parent=47 // pred_check_branch
          %285 = sbr.rel (%p283) target = $region52
        $region51: #{tpu_custom_call.1} parent=47 // pred_region
          %s286 = smul.u32 16, %s20
          %p287 = scmp.lt.s32.totalorder %s286, 31
          %s288 = scalar_select %p287, %s286, 31
          %s289 = smul.addr %s288, 4
          %s290 = scalar_lea.vmem %s0, %s289
          %s291 = smul.u32 16, %s20
        $region52: #{tpu_custom_call.1} parent=47 // pred_fallthru
          _
      $region48: #{tpu_custom_call.1} parent=5 // pred_fallthru
        _
      %p292 = scmp.le.s32.totalorder 1, %s20
      %p293 = scmp.lt.s32.totalorder %s20, 3
      %p294 = pnand %p292, %p293
      %p295 = pneg %p294
      // Predicated region
      $region53: #{tpu_custom_call.1} parent=5 // pred_check
        _
      $region54: #{tpu_custom_call.1} parent=5 // pred_check_branch
        %297 = sbr.rel (%p294) target = $region56
      $region55: #{tpu_custom_call.1} parent=5 // pred_region
        %s298 = ssub.s32 %s20, 1
        %s299 = smul.u32 16, %s25
        %p300 = scmp.lt.s32.totalorder %s299, 31
        %s301 = scalar_select %p300, %s299, 31
        %s302 = smul.addr %s301, 4
        %s303 = scalar_lea.vmem %s0, %s302
        %p304 = pneg %p46
        %p305 = pneg %p43
        %p306 = pneg %p67
        %p307 = pneg %p64
        %p308 = pneg %p88
        %p309 = pneg %p85
        %p310 = pneg %p109
        %p311 = pneg %p106
        %p312 = pneg %p130
        %p313 = pneg %p127
        %p314 = pneg %p151
        %p315 = pneg %p148
        %p316 = pneg %p172
        %p317 = pneg %p169
        %p318 = pneg %p193
        %p319 = pneg %p190
        %p320 = pneg %p214
        %p321 = pneg %p211
        %p322 = pneg %p240
        %p323 = pneg %p237
        %s324 = sand.u32 %s227, 1
        %s325 = scalar_lea.sflag [#allocation4], %s324
        %s326 = sand.u32 %s227, 1
        %s327 = scalar_lea.vmem [#allocation3], %s326
        %s328 = smul.u32 16, %s25
        %p329 = scmp.lt.s32.totalorder %s328, 31
        %s330 = scalar_select %p329, %s328, 31
        %s331 = smul.addr %s330, 4
        %s332 = scalar_lea.vmem %s0, %s331
        %s333 = smul.u32 16, %s25
        %v335 = vld [vmem:[%s332] sm:$0xf]
        %v336 = vld [vmem:[%s332 + $0x4] sm:$0xf]
        %v337 = vld [vmem:[%s332 + $0x8] sm:$0xf]
        %v338 = vld [vmem:[%s332 + $0xc] sm:$0xf]
        %v339 = vld [vmem:[%s332 + $0x10] sm:$0xf]
        %v340 = vld [vmem:[%s332 + $0x14] sm:$0xf]
        %v341 = vld [vmem:[%s332 + $0x18] sm:$0xf]
        %v342 = vld [vmem:[%s332 + $0x1c] sm:$0xf]
        %v343 = vld [vmem:[%s332 + $0x20] sm:$0xf]
        %v344 = vld [vmem:[%s332 + $0x24] sm:$0xf]
        %v345 = vld [vmem:[%s332 + $0x28] sm:$0xf]
        %v346 = vld [vmem:[%s332 + $0x2c] sm:$0xf]
        %v347 = vld [vmem:[%s332 + $0x30] sm:$0xf]
        %v348 = vld [vmem:[%s332 + $0x34] sm:$0xf]
        %v349 = vld [vmem:[%s332 + $0x38] sm:$0xf]
        %v350 = vld [vmem:[%s332 + $0x3c] sm:$0xf]
        %v351 = vld [vmem:[%s1] sm:$0xf]
        %v352 = vld [vmem:[%s1 + $0x4] sm:$0xf]
        %v353 = vld [vmem:[%s1 + $0x8] sm:$0xf]
        %v354 = vld [vmem:[%s1 + $0xc] sm:$0xf]
        %v355 = vld [vmem:[%s1 + $0x10] sm:$0xf]
        %v356 = vld [vmem:[%s1 + $0x14] sm:$0xf]
        %v357 = vld [vmem:[%s2] sm:$0x1]
        %v359 = vlaneseq
        %v360 = vshrl.u32 %v359, 7
        %v361 = vsub.s32 0, %v360
        %v362 = vrot.slane %v357, %v361
        %v380 = vunpack.c.l.b16 %v335
        %v381 = vunpack.c.l.b16 %v336
        %v382 = vunpack.c.l.b16 %v337
        %v383 = vunpack.c.l.b16 %v338
        %v384 = vunpack.c.l.b16 %v339
        %v385 = vunpack.c.l.b16 %v340
        %v386 = vunpack.c.l.b16 %v341
        %v387 = vunpack.c.l.b16 %v342
        %v388 = vunpack.c.l.b16 %v343
        %v389 = vunpack.c.l.b16 %v344
        %v390 = vunpack.c.l.b16 %v345
        %v391 = vunpack.c.l.b16 %v346
        %v392 = vunpack.c.l.b16 %v347
        %v393 = vunpack.c.l.b16 %v348
        %v394 = vunpack.c.l.b16 %v349
        %v395 = vunpack.c.l.b16 %v350
        %v396 = vpack.c.b16 %v381, %v380
        %v397 = vpack.c.b16 %v383, %v382
        %v398 = vpack.c.b16 %v385, %v384
        %v399 = vpack.c.b16 %v387, %v386
        %v400 = vpack.c.b16 %v389, %v388
        %v401 = vpack.c.b16 %v391, %v390
        %v402 = vpack.c.b16 %v393, %v392
        %v403 = vpack.c.b16 %v395, %v394
        %v410 = vunpack.c.l.b16 %v351
        %v411 = vunpack.c.l.b16 %v352
        %v412 = vunpack.c.l.b16 %v353
        %v413 = vunpack.c.l.b16 %v354
        %v414 = vunpack.c.l.b16 %v355
        %v415 = vunpack.c.l.b16 %v356
        %v416 = vpack.c.b16 %v411, %v410
        %v417 = vpack.c.b16 %v413, %v412
        %v418 = vpack.c.b16 %v415, %v414
        %vm422 = vcmask 392192
        %v424 = vsel %vm422, %v396, 0
        %v427 = vsel %vm422, %v397, 0
        %v430 = vsel %vm422, %v398, 0
        %v433 = vsel %vm422, %v399, 0
        %v436 = vsel %vm422, %v400, 0
        %v439 = vsel %vm422, %v401, 0
        %v442 = vsel %vm422, %v402, 0
        %v445 = vsel %vm422, %v403, 0
        %447 = vmatprep.subr.bf16.mxu0 0
        %448 = vmatpush1.bf16.msra.mxu0 0
        %449 = vmatprep.subr.bf16.mxu0 0
        %450 = vmatpush1.bf16.msra.mxu0 0
        %451 = vmatprep.subr.bf16.mxu0 0
        %452 = vmatpush1.bf16.msra.mxu0 0
        %453 = vmatprep.subr.bf16.mxu0 0
        %454 = vmatpush1.bf16.msra.mxu0 0
        %455 = vmatprep.subr.bf16.mxu0 0
        %456 = vmatpush1.bf16.msra.mxu0 0
        %457 = vmatprep.subr.bf16.mxu0 0
        %458 = vmatpush1.bf16.msra.mxu0 %v418
        %459 = vmatprep.subr.bf16.mxu0 0
        %460 = vmatpush1.bf16.msra.mxu0 %v417
        %461 = vmatprep.subr.bf16.mxu0 0
        %462 = vmatpush1.bf16.msra.mxu0 %v416
        %463 = vmatprep.subr.bf16.mxu0 0
        %464 = vmatpush2.bf16.msra.mxu0 0
        %465 = vmatprep.subr.bf16.mxu0 0
        %466 = vmatpush2.bf16.msra.mxu0 0
        %467 = vmatprep.subr.bf16.mxu0 0
        %468 = vmatpush2.bf16.msra.mxu0 0
        %469 = vmatprep.subr.bf16.mxu0 0
        %470 = vmatpush2.bf16.msra.mxu0 0
        %471 = vmatprep.subr.bf16.mxu0 0
        %472 = vmatpush2.bf16.msra.mxu0 0
        %473 = vmatprep.subr.bf16.mxu0 0
        %474 = vmatpush2.bf16.msra.mxu0 0
        %475 = vmatprep.subr.bf16.mxu0 0
        %476 = vmatpush2.bf16.msra.mxu0 0
        %477 = vmatprep.subr.bf16.mxu0 0
        %478 = vmatpush2.bf16.msra.mxu0 0
        %479 = vmatprep.mubr.bf16.mxu0 0
        %480 = vmatmul.mubr.bf16.gmra.mxu0 %v424
        %v481 = vpop.f32.mrf.mxu0
        %v482 = vadd.f32 %v362, %v481
        %v483 = vpop.f32.mrf.mxu0
        %v484 = vpop.f32.mrf.mxu0
        %v485 = vadd.f32 %v362, %v484
        %v486 = vpop.f32.mrf.mxu0
        %487 = vmatprep.mubr.bf16.mxu0 0
        %488 = vmatmul.mubr.bf16.gmra.mxu0 %v427
        %v489 = vpop.f32.mrf.mxu0
        %v490 = vadd.f32 %v362, %v489
        %v491 = vpop.f32.mrf.mxu0
        %v492 = vpop.f32.mrf.mxu0
        %v493 = vadd.f32 %v362, %v492
        %v494 = vpop.f32.mrf.mxu0
        %495 = vmatprep.mubr.bf16.mxu0 0
        %496 = vmatmul.mubr.bf16.gmra.mxu0 %v430
        %v497 = vpop.f32.mrf.mxu0
        %v498 = vadd.f32 %v362, %v497
        %v499 = vpop.f32.mrf.mxu0
        %v500 = vpop.f32.mrf.mxu0
        %v501 = vadd.f32 %v362, %v500
        %v502 = vpop.f32.mrf.mxu0
        %503 = vmatprep.mubr.bf16.mxu0 0
        %504 = vmatmul.mubr.bf16.gmra.mxu0 %v433
        %v505 = vpop.f32.mrf.mxu0
        %v506 = vadd.f32 %v362, %v505
        %v507 = vpop.f32.mrf.mxu0
        %v508 = vpop.f32.mrf.mxu0
        %v509 = vadd.f32 %v362, %v508
        %v510 = vpop.f32.mrf.mxu0
        %511 = vmatprep.mubr.bf16.mxu0 0
        %512 = vmatmul.mubr.bf16.gmra.mxu0 %v436
        %v513 = vpop.f32.mrf.mxu0
        %v514 = vadd.f32 %v362, %v513
        %v515 = vpop.f32.mrf.mxu0
        %v516 = vpop.f32.mrf.mxu0
        %v517 = vadd.f32 %v362, %v516
        %v518 = vpop.f32.mrf.mxu0
        %519 = vmatprep.mubr.bf16.mxu0 0
        %520 = vmatmul.mubr.bf16.gmra.mxu0 %v439
        %v521 = vpop.f32.mrf.mxu0
        %v522 = vadd.f32 %v362, %v521
        %v523 = vpop.f32.mrf.mxu0
        %v524 = vpop.f32.mrf.mxu0
        %v525 = vadd.f32 %v362, %v524
        %v526 = vpop.f32.mrf.mxu0
        %527 = vmatprep.mubr.bf16.mxu0 0
        %528 = vmatmul.mubr.bf16.gmra.mxu0 %v442
        %v529 = vpop.f32.mrf.mxu0
        %v530 = vadd.f32 %v362, %v529
        %v531 = vpop.f32.mrf.mxu0
        %v532 = vpop.f32.mrf.mxu0
        %v533 = vadd.f32 %v362, %v532
        %v534 = vpop.f32.mrf.mxu0
        %535 = vmatprep.mubr.bf16.mxu0 0
        %536 = vmatmul.mubr.bf16.gmra.mxu0 %v445
        %v537 = vpop.f32.mrf.mxu0
        %v538 = vadd.f32 %v362, %v537
        %v539 = vpop.f32.mrf.mxu0
        %v540 = vpop.f32.mrf.mxu0
        %v541 = vadd.f32 %v362, %v540
        %v542 = vpop.f32.mrf.mxu0
        %543 = vdwg.mxu0
        %v544 = vmax.f32 %v482, 0.0
        %v545 = vmax.f32 %v485, 0.0
        %v546 = vmax.f32 %v490, 0.0
        %v547 = vmax.f32 %v493, 0.0
        %v548 = vmax.f32 %v498, 0.0
        %v549 = vmax.f32 %v501, 0.0
        %v550 = vmax.f32 %v506, 0.0
        %v551 = vmax.f32 %v509, 0.0
        %v552 = vmax.f32 %v514, 0.0
        %v553 = vmax.f32 %v517, 0.0
        %v554 = vmax.f32 %v522, 0.0
        %v555 = vmax.f32 %v525, 0.0
        %v556 = vmax.f32 %v530, 0.0
        %v557 = vmax.f32 %v533, 0.0
        %v558 = vmax.f32 %v538, 0.0
        %v559 = vmax.f32 %v541, 0.0
        %v560 = vpack.c.bf16 %v545, %v544
        %v561 = vpack.c.bf16 %v547, %v546
        %v562 = vpack.c.bf16 %v549, %v548
        %v563 = vpack.c.bf16 %v551, %v550
        %v564 = vpack.c.bf16 %v553, %v552
        %v565 = vpack.c.bf16 %v555, %v554
        %v566 = vpack.c.bf16 %v557, %v556
        %v567 = vpack.c.bf16 %v559, %v558
        %v568 = vld [vmem:[%s3] sm:$0xf]
        %v569 = vld [vmem:[%s3 + $0x4] sm:$0xf]
        %v570 = vld [vmem:[%s3 + $0x8] sm:$0xf]
        %v571 = vld [vmem:[%s3 + $0xc] sm:$0xf]
        %v572 = vld [vmem:[%s3 + $0x10] sm:$0xf]
        %v573 = vld [vmem:[%s3 + $0x14] sm:$0xf]
        %v574 = vld [vmem:[%s3 + $0x18] sm:$0xf]
        %v575 = vld [vmem:[%s3 + $0x1c] sm:$0xf]
        %v576 = vld [vmem:[%s3 + $0x20] sm:$0xf]
        %v577 = vld [vmem:[%s3 + $0x24] sm:$0xf]
        %v578 = vld [vmem:[%s3 + $0x28] sm:$0xf]
        %v579 = vld [vmem:[%s3 + $0x2c] sm:$0xf]
        %v580 = vld [vmem:[%s3 + $0x30] sm:$0xf]
        %v581 = vld [vmem:[%s3 + $0x34] sm:$0xf]
        %v582 = vld [vmem:[%s3 + $0x38] sm:$0xf]
        %v583 = vld [vmem:[%s3 + $0x3c] sm:$0xf]
        %v584 = vld [vmem:[%s4] sm:$0x1]
        %v586 = vlaneseq
        %v587 = vshrl.u32 %v586, 7
        %v588 = vsub.s32 0, %v587
        %v589 = vrot.slane %v584, %v588
        %v607 = vunpack.c.l.b16 %v568
        %v608 = vunpack.c.l.b16 %v569
        %v609 = vunpack.c.l.b16 %v570
        %v610 = vunpack.c.l.b16 %v571
        %v611 = vunpack.c.l.b16 %v572
        %v612 = vunpack.c.l.b16 %v573
        %v613 = vunpack.c.l.b16 %v574
        %v614 = vunpack.c.l.b16 %v575
        %v615 = vunpack.c.l.b16 %v576
        %v616 = vunpack.c.l.b16 %v577
        %v617 = vunpack.c.l.b16 %v578
        %v618 = vunpack.c.l.b16 %v579
        %v619 = vunpack.c.l.b16 %v580
        %v620 = vunpack.c.l.b16 %v581
        %v621 = vunpack.c.l.b16 %v582
        %v622 = vunpack.c.l.b16 %v583
        %v623 = vpack.c.b16 %v608, %v607
        %v624 = vpack.c.b16 %v610, %v609
        %v625 = vpack.c.b16 %v612, %v611
        %v626 = vpack.c.b16 %v614, %v613
        %v627 = vpack.c.b16 %v616, %v615
        %v628 = vpack.c.b16 %v618, %v617
        %v629 = vpack.c.b16 %v620, %v619
        %v630 = vpack.c.b16 %v622, %v621
        %639 = vmatprep.subr.bf16.mxu0 0
        %640 = vmatpush1.bf16.msra.mxu0 %v630
        %641 = vmatprep.subr.bf16.mxu0 0
        %642 = vmatpush1.bf16.msra.mxu0 %v629
        %643 = vmatprep.subr.bf16.mxu0 0
        %644 = vmatpush1.bf16.msra.mxu0 %v628
        %645 = vmatprep.subr.bf16.mxu0 0
        %646 = vmatpush1.bf16.msra.mxu0 %v627
        %647 = vmatprep.subr.bf16.mxu0 0
        %648 = vmatpush1.bf16.msra.mxu0 %v626
        %649 = vmatprep.subr.bf16.mxu0 0
        %650 = vmatpush1.bf16.msra.mxu0 %v625
        %651 = vmatprep.subr.bf16.mxu0 0
        %652 = vmatpush1.bf16.msra.mxu0 %v624
        %653 = vmatprep.subr.bf16.mxu0 0
        %654 = vmatpush1.bf16.msra.mxu0 %v623
        %655 = vmatprep.subr.bf16.mxu0 0
        %656 = vmatpush2.bf16.msra.mxu0 0
        %657 = vmatprep.subr.bf16.mxu0 0
        %658 = vmatpush2.bf16.msra.mxu0 0
        %659 = vmatprep.subr.bf16.mxu0 0
        %660 = vmatpush2.bf16.msra.mxu0 0
        %661 = vmatprep.subr.bf16.mxu0 0
        %662 = vmatpush2.bf16.msra.mxu0 0
        %663 = vmatprep.subr.bf16.mxu0 0
        %664 = vmatpush2.bf16.msra.mxu0 0
        %665 = vmatprep.subr.bf16.mxu0 0
        %666 = vmatpush2.bf16.msra.mxu0 0
        %667 = vmatprep.subr.bf16.mxu0 0
        %668 = vmatpush2.bf16.msra.mxu0 0
        %669 = vmatprep.subr.bf16.mxu0 0
        %670 = vmatpush2.bf16.msra.mxu0 0
        %671 = vmatprep.mubr.bf16.mxu0 0
        %672 = vmatmul.mubr.bf16.gmra.mxu0 %v560
        %v673 = vpop.f32.mrf.mxu0
        %v674 = vadd.f32 %v589, %v673
        %v675 = vpop.f32.mrf.mxu0
        %v676 = vpop.f32.mrf.mxu0
        %v677 = vadd.f32 %v589, %v676
        %v678 = vpop.f32.mrf.mxu0
        %679 = vmatprep.mubr.bf16.mxu0 0
        %680 = vmatmul.mubr.bf16.gmra.mxu0 %v561
        %v681 = vpop.f32.mrf.mxu0
        %v682 = vadd.f32 %v589, %v681
        %v683 = vpop.f32.mrf.mxu0
        %v684 = vpop.f32.mrf.mxu0
        %v685 = vadd.f32 %v589, %v684
        %v686 = vpop.f32.mrf.mxu0
        %687 = vmatprep.mubr.bf16.mxu0 0
        %688 = vmatmul.mubr.bf16.gmra.mxu0 %v562
        %v689 = vpop.f32.mrf.mxu0
        %v690 = vadd.f32 %v589, %v689
        %v691 = vpop.f32.mrf.mxu0
        %v692 = vpop.f32.mrf.mxu0
        %v693 = vadd.f32 %v589, %v692
        %v694 = vpop.f32.mrf.mxu0
        %695 = vmatprep.mubr.bf16.mxu0 0
        %696 = vmatmul.mubr.bf16.gmra.mxu0 %v563
        %v697 = vpop.f32.mrf.mxu0
        %v698 = vadd.f32 %v589, %v697
        %v699 = vpop.f32.mrf.mxu0
        %v700 = vpop.f32.mrf.mxu0
        %v701 = vadd.f32 %v589, %v700
        %v702 = vpop.f32.mrf.mxu0
        %703 = vmatprep.mubr.bf16.mxu0 0
        %704 = vmatmul.mubr.bf16.gmra.mxu0 %v564
        %v705 = vpop.f32.mrf.mxu0
        %v706 = vadd.f32 %v589, %v705
        %v707 = vpop.f32.mrf.mxu0
        %v708 = vpop.f32.mrf.mxu0
        %v709 = vadd.f32 %v589, %v708
        %v710 = vpop.f32.mrf.mxu0
        %711 = vmatprep.mubr.bf16.mxu0 0
        %712 = vmatmul.mubr.bf16.gmra.mxu0 %v565
        %v713 = vpop.f32.mrf.mxu0
        %v714 = vadd.f32 %v589, %v713
        %v715 = vpop.f32.mrf.mxu0
        %v716 = vpop.f32.mrf.mxu0
        %v717 = vadd.f32 %v589, %v716
        %v718 = vpop.f32.mrf.mxu0
        %719 = vmatprep.mubr.bf16.mxu0 0
        %720 = vmatmul.mubr.bf16.gmra.mxu0 %v566
        %v721 = vpop.f32.mrf.mxu0
        %v722 = vadd.f32 %v589, %v721
        %v723 = vpop.f32.mrf.mxu0
        %v724 = vpop.f32.mrf.mxu0
        %v725 = vadd.f32 %v589, %v724
        %v726 = vpop.f32.mrf.mxu0
        %727 = vmatprep.mubr.bf16.mxu0 0
        %728 = vmatmul.mubr.bf16.gmra.mxu0 %v567
        %v729 = vpop.f32.mrf.mxu0
        %v730 = vadd.f32 %v589, %v729
        %v731 = vpop.f32.mrf.mxu0
        %v732 = vpop.f32.mrf.mxu0
        %v733 = vadd.f32 %v589, %v732
        %v734 = vpop.f32.mrf.mxu0
        %735 = vdwg.mxu0
        %v736 = vmax.f32 %v674, 0.0
        %v737 = vmax.f32 %v677, 0.0
        %v738 = vmax.f32 %v682, 0.0
        %v739 = vmax.f32 %v685, 0.0
        %v740 = vmax.f32 %v690, 0.0
        %v741 = vmax.f32 %v693, 0.0
        %v742 = vmax.f32 %v698, 0.0
        %v743 = vmax.f32 %v701, 0.0
        %v744 = vmax.f32 %v706, 0.0
        %v745 = vmax.f32 %v709, 0.0
        %v746 = vmax.f32 %v714, 0.0
        %v747 = vmax.f32 %v717, 0.0
        %v748 = vmax.f32 %v722, 0.0
        %v749 = vmax.f32 %v725, 0.0
        %v750 = vmax.f32 %v730, 0.0
        %v751 = vmax.f32 %v733, 0.0
        %v752 = vpack.c.bf16 %v737, %v736
        %v753 = vpack.c.bf16 %v739, %v738
        %v754 = vpack.c.bf16 %v741, %v740
        %v755 = vpack.c.bf16 %v743, %v742
        %v756 = vpack.c.bf16 %v745, %v744
        %v757 = vpack.c.bf16 %v747, %v746
        %v758 = vpack.c.bf16 %v749, %v748
        %v759 = vpack.c.bf16 %v751, %v750
        %v760 = vld [vmem:[%s5] sm:$0xf]
        %v761 = vld [vmem:[%s5 + $0x4] sm:$0xf]
        %v762 = vld [vmem:[%s5 + $0x8] sm:$0xf]
        %v763 = vld [vmem:[%s5 + $0xc] sm:$0xf]
        %v764 = vld [vmem:[%s5 + $0x10] sm:$0xf]
        %v765 = vld [vmem:[%s5 + $0x14] sm:$0xf]
        %v766 = vld [vmem:[%s5 + $0x18] sm:$0xf]
        %v767 = vld [vmem:[%s5 + $0x1c] sm:$0xf]
        %v768 = vld [vmem:[%s6] sm:$0x1]
        %v770 = vlaneseq
        %v771 = vshrl.u32 %v770, 7
        %v772 = vsub.s32 0, %v771
        %v773 = vrot.slane %v768, %v772
        %v783 = vunpack.c.l.b16 %v760
        %v784 = vunpack.c.l.b16 %v761
        %v785 = vunpack.c.l.b16 %v762
        %v786 = vunpack.c.l.b16 %v763
        %v787 = vunpack.c.l.b16 %v764
        %v788 = vunpack.c.l.b16 %v765
        %v789 = vunpack.c.l.b16 %v766
        %v790 = vunpack.c.l.b16 %v767
        %v791 = vpack.c.b16 %v784, %v783
        %v792 = vpack.c.b16 %v786, %v785
        %v793 = vpack.c.b16 %v788, %v787
        %v794 = vpack.c.b16 %v790, %v789
        %vm799 = vcmask 523264
        %v801 = vsel %vm799, %v752, 0
        %v804 = vsel %vm799, %v753, 0
        %v807 = vsel %vm799, %v754, 0
        %v810 = vsel %vm799, %v755, 0
        %v813 = vsel %vm799, %v756, 0
        %v816 = vsel %vm799, %v757, 0
        %v819 = vsel %vm799, %v758, 0
        %v822 = vsel %vm799, %v759, 0
        %824 = vmatprep.subr.bf16.mxu0 0
        %825 = vmatpush1.bf16.msra.mxu0 0
        %826 = vmatprep.subr.bf16.mxu0 0
        %827 = vmatpush1.bf16.msra.mxu0 0
        %828 = vmatprep.subr.bf16.mxu0 0
        %829 = vmatpush1.bf16.msra.mxu0 0
        %830 = vmatprep.subr.bf16.mxu0 0
        %831 = vmatpush1.bf16.msra.mxu0 0
        %832 = vmatprep.subr.bf16.mxu0 0
        %833 = vmatpush1.bf16.msra.mxu0 %v794
        %834 = vmatprep.subr.bf16.mxu0 0
        %835 = vmatpush1.bf16.msra.mxu0 %v793
        %836 = vmatprep.subr.bf16.mxu0 0
        %837 = vmatpush1.bf16.msra.mxu0 %v792
        %838 = vmatprep.subr.bf16.mxu0 0
        %839 = vmatpush1.bf16.msra.mxu0 %v791
        %840 = vmatprep.subr.bf16.mxu0 0
        %841 = vmatpush2.bf16.msra.mxu0 0
        %842 = vmatprep.subr.bf16.mxu0 0
        %843 = vmatpush2.bf16.msra.mxu0 0
        %844 = vmatprep.subr.bf16.mxu0 0
        %845 = vmatpush2.bf16.msra.mxu0 0
        %846 = vmatprep.subr.bf16.mxu0 0
        %847 = vmatpush2.bf16.msra.mxu0 0
        %848 = vmatprep.subr.bf16.mxu0 0
        %849 = vmatpush2.bf16.msra.mxu0 0
        %850 = vmatprep.subr.bf16.mxu0 0
        %851 = vmatpush2.bf16.msra.mxu0 0
        %852 = vmatprep.subr.bf16.mxu0 0
        %853 = vmatpush2.bf16.msra.mxu0 0
        %854 = vmatprep.subr.bf16.mxu0 0
        %855 = vmatpush2.bf16.msra.mxu0 0
        %856 = vmatprep.mubr.bf16.mxu0 0
        %857 = vmatmul.mubr.bf16.gmra.mxu0 %v801
        %v858 = vpop.f32.mrf.mxu0
        %v859 = vadd.f32 %v773, %v858
        %v860 = vpop.f32.mrf.mxu0
        %v861 = vpop.f32.mrf.mxu0
        %v862 = vadd.f32 %v773, %v861
        %v863 = vpop.f32.mrf.mxu0
        %864 = vmatprep.mubr.bf16.mxu0 0
        %865 = vmatmul.mubr.bf16.gmra.mxu0 %v804
        %v866 = vpop.f32.mrf.mxu0
        %v867 = vadd.f32 %v773, %v866
        %v868 = vpop.f32.mrf.mxu0
        %v869 = vpop.f32.mrf.mxu0
        %v870 = vadd.f32 %v773, %v869
        %v871 = vpop.f32.mrf.mxu0
        %872 = vmatprep.mubr.bf16.mxu0 0
        %873 = vmatmul.mubr.bf16.gmra.mxu0 %v807
        %v874 = vpop.f32.mrf.mxu0
        %v875 = vadd.f32 %v773, %v874
        %v876 = vpop.f32.mrf.mxu0
        %v877 = vpop.f32.mrf.mxu0
        %v878 = vadd.f32 %v773, %v877
        %v879 = vpop.f32.mrf.mxu0
        %880 = vmatprep.mubr.bf16.mxu0 0
        %881 = vmatmul.mubr.bf16.gmra.mxu0 %v810
        %v882 = vpop.f32.mrf.mxu0
        %v883 = vadd.f32 %v773, %v882
        %v884 = vpop.f32.mrf.mxu0
        %v885 = vpop.f32.mrf.mxu0
        %v886 = vadd.f32 %v773, %v885
        %v887 = vpop.f32.mrf.mxu0
        %888 = vmatprep.mubr.bf16.mxu0 0
        %889 = vmatmul.mubr.bf16.gmra.mxu0 %v813
        %v890 = vpop.f32.mrf.mxu0
        %v891 = vadd.f32 %v773, %v890
        %v892 = vpop.f32.mrf.mxu0
        %v893 = vpop.f32.mrf.mxu0
        %v894 = vadd.f32 %v773, %v893
        %v895 = vpop.f32.mrf.mxu0
        %896 = vmatprep.mubr.bf16.mxu0 0
        %897 = vmatmul.mubr.bf16.gmra.mxu0 %v816
        %v898 = vpop.f32.mrf.mxu0
        %v899 = vadd.f32 %v773, %v898
        %v900 = vpop.f32.mrf.mxu0
        %v901 = vpop.f32.mrf.mxu0
        %v902 = vadd.f32 %v773, %v901
        %v903 = vpop.f32.mrf.mxu0
        %904 = vmatprep.mubr.bf16.mxu0 0
        %905 = vmatmul.mubr.bf16.gmra.mxu0 %v819
        %v906 = vpop.f32.mrf.mxu0
        %v907 = vadd.f32 %v773, %v906
        %v908 = vpop.f32.mrf.mxu0
        %v909 = vpop.f32.mrf.mxu0
        %v910 = vadd.f32 %v773, %v909
        %v911 = vpop.f32.mrf.mxu0
        %912 = vmatprep.mubr.bf16.mxu0 0
        %913 = vmatmul.mubr.bf16.gmra.mxu0 %v822
        %v914 = vpop.f32.mrf.mxu0
        %v915 = vadd.f32 %v773, %v914
        %v916 = vpop.f32.mrf.mxu0
        %v917 = vpop.f32.mrf.mxu0
        %v918 = vadd.f32 %v773, %v917
        %v919 = vpop.f32.mrf.mxu0
        %920 = vdwg.mxu0
        %v921 = vmax.f32 %v859, 0.0
        %v922 = vmax.f32 %v862, 0.0
        %v923 = vmax.f32 %v867, 0.0
        %v924 = vmax.f32 %v870, 0.0
        %v925 = vmax.f32 %v875, 0.0
        %v926 = vmax.f32 %v878, 0.0
        %v927 = vmax.f32 %v883, 0.0
        %v928 = vmax.f32 %v886, 0.0
        %v929 = vmax.f32 %v891, 0.0
        %v930 = vmax.f32 %v894, 0.0
        %v931 = vmax.f32 %v899, 0.0
        %v932 = vmax.f32 %v902, 0.0
        %v933 = vmax.f32 %v907, 0.0
        %v934 = vmax.f32 %v910, 0.0
        %v935 = vmax.f32 %v915, 0.0
        %v936 = vmax.f32 %v918, 0.0
        %v937 = vld [vmem:[%s7] sm:$0x1]
        %v938 = vpack.c.bf16 %v922, %v921
        %v939 = vpack.c.bf16 %v924, %v923
        %v940 = vpack.c.bf16 %v926, %v925
        %v941 = vpack.c.bf16 %v928, %v927
        %v942 = vpack.c.bf16 %v930, %v929
        %v943 = vpack.c.bf16 %v932, %v931
        %v944 = vpack.c.bf16 %v934, %v933
        %v945 = vpack.c.bf16 %v936, %v935
        %v946 = vld [vmem:[#allocation2] sm:$0x1]
        %948 = vset.pattern.permute.xlu0 0
        %949 = vperm.xlu0 %948, %v946
        %v950 = vpop.permute.xlu0 %949
        %v952 = vlaneseq
        %v953 = vshrl.u32 %v952, 7
        %v954 = vsub.s32 0, %v953
        %v955 = vrot.slane %v950, %v954
        %vm956 = vcmask 261120
        %v958 = vsel %vm956, %v937, 0
        %v961 = vsel %vm956, %v938, 0
        %v964 = vsel %vm956, %v939, 0
        %v967 = vsel %vm956, %v940, 0
        %v970 = vsel %vm956, %v941, 0
        %v973 = vsel %vm956, %v942, 0
        %v976 = vsel %vm956, %v943, 0
        %v979 = vsel %vm956, %v944, 0
        %v982 = vsel %vm956, %v945, 0
        %984 = vmatprep.subr.bf16.mxu0 0
        %985 = vmatpush1.bf16.xpose.msra.mxu0 %v982
        %986 = vmatprep.subr.bf16.mxu0 0
        %987 = vmatpush1.bf16.xpose.msra.mxu0 %v979
        %988 = vmatprep.subr.bf16.mxu0 0
        %989 = vmatpush1.bf16.xpose.msra.mxu0 %v976
        %990 = vmatprep.subr.bf16.mxu0 0
        %991 = vmatpush1.bf16.xpose.msra.mxu0 %v973
        %992 = vmatprep.subr.bf16.mxu0 0
        %993 = vmatpush1.bf16.xpose.msra.mxu0 %v970
        %994 = vmatprep.subr.bf16.mxu0 0
        %995 = vmatpush1.bf16.xpose.msra.mxu0 %v967
        %996 = vmatprep.subr.bf16.mxu0 0
        %997 = vmatpush1.bf16.xpose.msra.mxu0 %v964
        %998 = vmatprep.subr.bf16.mxu0 0
        %999 = vmatpush1.bf16.xpose.msra.mxu0 %v961
        %1000 = vmatprep.subr.bf16.mxu0 0
        %1001 = vmatpush2.bf16.xpose.msra.mxu0 0
        %1002 = vmatprep.subr.bf16.mxu0 0
        %1003 = vmatpush2.bf16.xpose.msra.mxu0 0
        %1004 = vmatprep.subr.bf16.mxu0 0
        %1005 = vmatpush2.bf16.xpose.msra.mxu0 0
        %1006 = vmatprep.subr.bf16.mxu0 0
        %1007 = vmatpush2.bf16.xpose.msra.mxu0 0
        %1008 = vmatprep.subr.bf16.mxu0 0
        %1009 = vmatpush2.bf16.xpose.msra.mxu0 0
        %1010 = vmatprep.subr.bf16.mxu0 0
        %1011 = vmatpush2.bf16.xpose.msra.mxu0 0
        %1012 = vmatprep.subr.bf16.mxu0 0
        %1013 = vmatpush2.bf16.xpose.msra.mxu0 0
        %1014 = vmatprep.subr.bf16.mxu0 0
        %1015 = vmatpush2.bf16.xpose.msra.mxu0 0
        %1016 = vmatprep.mubr.bf16.mxu0 0
        %1017 = vmatmul.mubr.bf16.gmra.mxu0 %v958
        %v1018 = vpop.f32.mrf.mxu0
        %v1019 = vadd.f32 %v955, %v1018
        %v1020 = vpop.f32.mrf.mxu0
        %v1021 = vpop.f32.mrf.mxu0
        %v1022 = vpop.f32.mrf.mxu0
        %1023 = vdwg.mxu0
        %v1024 = vxor.u32 %v1019, 2147483648
        %v1025 = vmul.f32 %v1024, 1.442695
        %v1026 = vpow.pop %v1025
        %v1027 = vadd.f32 %v1026, 1.0
        %v1028 = vrcp.pop %v1027
        %v1029 = vmul.f32 1.0, %v1028
        %1030 = vst [vmem:[%s327] sm:$0x1] %v1029
        %s1031 = sand.u32 %s227, 1
        %s1032 = scalar_lea.sflag [#allocation4], %s1031
        %s1033 = sand.u32 %s227, 1
        %s1034 = scalar_lea.vmem [#allocation3], %s1033
        // Predicated region
        $region57: #{tpu_custom_call.1} parent=55 // pred_check
          %p1035 = pneg %p237
        $region58: #{tpu_custom_call.1} parent=55 // pred_check_branch
          %1037 = sbr.rel (%p1035) target = $region60
        $region59: #{tpu_custom_call.1} parent=55 // pred_region
          %s1039 = ssub.s32 16, 16
          %1040 = vsyncadd %s1032, %s1039
          %s1041 = smul.addr %s25, 16
          %s1042 = scalar_lea.hbm %s9, %s1041
          %s1044 = sshll.u32 %s1034, 4
          %s1045 = int_to_ptr.vmem [resolvable:$true] %s1044
          %1047 = dma.vmem_to_hbm [thread:$0]  %s1045, 16, %s1042, %s1032
        $region60: #{tpu_custom_call.1} parent=55 // pred_fallthru
          _
      $region56: #{tpu_custom_call.1} parent=5 // pred_fallthru
        _
      %p1048 = scmp.le.s32.totalorder 2, %s20
      // Predicated region
      $region61: #{tpu_custom_call.1} parent=5 // pred_check
        %p1049 = pneg %p1048
      $region62: #{tpu_custom_call.1} parent=5 // pred_check_branch
        %1051 = sbr.rel (%p1049) target = $region64
      $region63: #{tpu_custom_call.1} parent=5 // pred_region
        %s1052 = ssub.s32 %s20, 2
        // Predicated region
        $region65: #{tpu_custom_call.1} parent=63 // pred_check
          %p1053 = pneg %p243
        $region66: #{tpu_custom_call.1} parent=63 // pred_check_branch
          %1055 = sbr.rel (%p1053) target = $region68
        $region67: #{tpu_custom_call.1} parent=63 // pred_region
          %s1056 = sand.u32 %s228, 1
          %s1057 = scalar_lea.sflag [#allocation4], %s1056
          %s1058 = sand.u32 %s228, 1
          %s1059 = scalar_lea.vmem [#allocation3], %s1058
          %1060 = dma.done %s1057, 16
        $region68: #{tpu_custom_call.1} parent=63 // pred_fallthru
          _
      $region64: #{tpu_custom_call.1} parent=5 // pred_fallthru
        _
    $region6: #{tpu_custom_call.1} parent=1 // loop_footer
      %s24 = sadd.s32 1, %s20
    $region7: #{tpu_custom_call.1} parent=1 // loop_footer_branch
      %19 = sbr.rel target = $region3
    $region8: #{tpu_custom_call.1} parent=1 // loop_exit
      _
    %1061 = vsyncpa [#allocation4], 1
    %s1062 = scalar_lea.sflag [#allocation4], 1
    %1063 = vsyncpa %s1062, 1

</llo_original>
